<compile_context>
chip_gen: v5e
topology: v5e:2x2
jax: 0.10.0
libtpu: 0.0.40
codegen_flags: <defaults>
</compile_context>

<pallas_src>
import functools

import jax
import jax.numpy as jnp
from jax.experimental import pallas as pl
from jax.experimental.pallas import tpu as pltpu


def _round_up(x: int, m: int) -> int:
    return ((x + m - 1) // m) * m


def _margin_loss_kernel(logits_ref, labels_ref, out_ref, *, delta,
                        n_rows, n_cols, row_tile, col_tile,
                        mask_rows, mask_cols):
    x = logits_ref[...].astype(jnp.float32)
    y = 2.0 * labels_ref[...].astype(jnp.float32) - 1.0
    hinge = jnp.maximum(jnp.float32(delta) - x * y, 0.0)

    # Mask out-of-range rows/lanes of boundary blocks (compile-time gated).
    if mask_rows or mask_cols:
        mask = None
        if mask_rows:
            rows_valid = n_rows - pl.program_id(0) * row_tile
            rid = jax.lax.broadcasted_iota(jnp.int32, (row_tile, col_tile), 0)
            mask = rid < rows_valid
        if mask_cols:
            cols_valid = n_cols - pl.program_id(1) * col_tile
            cid = jax.lax.broadcasted_iota(jnp.int32, (row_tile, col_tile), 1)
            cmask = cid < cols_valid
            mask = cmask if mask is None else (mask & cmask)
        hinge = jnp.where(mask, hinge, jnp.float32(0.0))

    # Per-(sublane, lane) partial sums: splitting the sublane axis and summing
    # over the new leading axis is pure cross-vreg VPU adds hidden under the
    # DMA shadow.  The cross-lane reduce happens once, outside the kernel.
    partial = jnp.sum(hinge.reshape(row_tile // 8, 8, col_tile), axis=0)
    out_ref[...] = partial.reshape(1, 8, col_tile)


def margin_loss(logits, labels, delta: float = 1.0,
                row_tile: int | None = None, col_tile: int | None = None):
    """Pallas implementation of MarginLoss.forward. Returns a scalar f32."""
    assert logits.shape == labels.shape, "logits/labels must share a shape"

    # Flatten to 2-D [rows, classes]; the loss is a mean over all elements.
    if logits.ndim == 1:
        logits = logits.reshape(1, -1)
        labels = labels.reshape(1, -1)
    elif logits.ndim > 2:
        last = logits.shape[-1]
        logits = logits.reshape(-1, last)
        labels = labels.reshape(-1, last)

    B, C = logits.shape
    total = B * C

    # --- tile sizing: mem-bound streaming kernel -> big, VMEM-bounded blocks ---
    itemsize = max(jnp.dtype(logits.dtype).itemsize, jnp.dtype(labels.dtype).itemsize)
    target_block_bytes = 2 * 1024 * 1024  # ~2 MiB/input block; 2 inputs x 2 bufs
                                          # ~= 8-16 MiB pipeline, fits every gen
                                          # (incl. v7x's 64 MiB physical VMEM).
    if col_tile is None:
        col_tile = min(_round_up(C, 128), 2048)
    else:
        col_tile = _round_up(col_tile, 128)
    col_tile = min(col_tile, _round_up(C, 128))

    if row_tile is None:
        row_tile = max(8, (target_block_bytes // (col_tile * itemsize)) // 8 * 8)
    else:
        row_tile = _round_up(row_tile, 8)
    row_tile = min(row_tile, _round_up(B, 8))

    nr = pl.cdiv(B, row_tile)
    nc = pl.cdiv(C, col_tile)

    kernel = functools.partial(
        _margin_loss_kernel,
        delta=float(delta),
        n_rows=B, n_cols=C,
        row_tile=row_tile, col_tile=col_tile,
        mask_rows=(B % row_tile) != 0,
        mask_cols=(C % col_tile) != 0,
    )

    partials = pl.pallas_call(
        kernel,
        out_shape=jax.ShapeDtypeStruct((nr, 8, nc * col_tile), jnp.float32),
        grid_spec=pltpu.PrefetchScalarGridSpec(
            num_scalar_prefetch=0,
            grid=(nr, nc),
            in_specs=[
                pl.BlockSpec((row_tile, col_tile), lambda i, j: (i, j)),
                pl.BlockSpec((row_tile, col_tile), lambda i, j: (i, j)),
            ],
            out_specs=pl.BlockSpec((1, 8, col_tile), lambda i, j: (i, 0, j)),
        ),
        compiler_params=pltpu.CompilerParams(
            # No cross-step accumulation -> both grid axes fully parallel.
            dimension_semantics=("parallel", "parallel"),
            vmem_limit_bytes=32 * 1024 * 1024,
        ),
    )(logits, labels)

    # Tiny final reduction (nr * 8 * nc*col_tile f32 elements) outside the kernel.
    return jnp.sum(partials) / jnp.float32(total)


def margin_loss_ref(logits, labels, delta: float = 1.0):
    y = 2.0 * labels.astype(jnp.float32) - 1.0
    return jnp.mean(jnp.maximum(jnp.float32(delta) - logits.astype(jnp.float32) * y, 0.0))


if __name__ == "__main__":
    key = jax.random.PRNGKey(0)
    k1, k2, k3, k4 = jax.random.split(key, 4)

    # Case 1: exact tiling, f32 logits and {0,1} f32 labels.
    B, C = 8, 128
    logits = jax.random.normal(k1, (B, C), dtype=jnp.float32)
    labels = jax.random.bernoulli(k2, 0.5, (B, C)).astype(jnp.float32)
    out = jax.block_until_ready(margin_loss(logits, labels, delta=1.0))
    ref = jax.block_until_ready(margin_loss_ref(logits, labels, delta=1.0))
    assert jnp.allclose(out, ref, rtol=1e-5, atol=1e-6), (out, ref)

    # Case 2: ragged tiles on both axes + narrow (bf16) inputs upcast in-kernel.
    B, C = 24, 384
    logits = jax.random.normal(k3, (B, C), dtype=jnp.float32).astype(jnp.bfloat16)
    labels = jax.random.bernoulli(k4, 0.5, (B, C)).astype(jnp.bfloat16)
    out = jax.block_until_ready(
        margin_loss(logits, labels, delta=1.0, row_tile=16, col_tile=256))
    ref = jax.block_until_ready(margin_loss_ref(logits, labels, delta=1.0))
    assert jnp.allclose(out, ref, rtol=1e-5, atol=1e-6), (out, ref)

    print("KERNEL_OK")
</pallas_src>

<mosaic_0001>
module attributes {stable_mosaic.version = 11 : i64} {
  func.func @_margin_loss_kernel(%arg0: i32, %arg1: i32, %arg2: memref<8x128xf32, #tpu.memory_space<vmem>>, %arg3: memref<8x128xf32, #tpu.memory_space<vmem>>, %arg4: memref<1x8x128xf32, #tpu.memory_space<vmem>>) attributes {dimension_semantics = [#tpu.dimension_semantics<parallel>, #tpu.dimension_semantics<parallel>], iteration_bounds = array<i64: 1, 1>, scalar_prefetch = 0 : i64, scratch_operands = 0 : i64, tpu.core_type = #tpu.core_type<tc>, window_params = [{transform_indices = @transform_0, window_bounds = array<i64: 8, 128>}, {transform_indices = @transform_1, window_bounds = array<i64: 8, 128>}, {transform_indices = @transform_2, window_bounds = array<i64: 1, 8, 128>}]} {
    %c0 = arith.constant 0 : index
    %c0_0 = arith.constant 0 : index
    %0 = vector.load %arg2[%c0, %c0_0] : memref<8x128xf32, #tpu.memory_space<vmem>>, vector<8x128xf32>
    %c0_1 = arith.constant 0 : index
    %c0_2 = arith.constant 0 : index
    %1 = vector.load %arg3[%c0_1, %c0_2] : memref<8x128xf32, #tpu.memory_space<vmem>>, vector<8x128xf32>
    %cst = arith.constant 2.000000e+00 : f32
    %2 = vector.broadcast %cst : f32 to vector<8x128xf32>
    %3 = arith.mulf %2, %1 : vector<8x128xf32>
    %cst_3 = arith.constant 1.000000e+00 : f32
    %4 = vector.broadcast %cst_3 : f32 to vector<8x128xf32>
    %5 = arith.subf %3, %4 : vector<8x128xf32>
    %6 = arith.mulf %0, %5 : vector<8x128xf32>
    %cst_4 = arith.constant 1.000000e+00 : f32
    %7 = vector.broadcast %cst_4 : f32 to vector<8x128xf32>
    %8 = arith.subf %7, %6 : vector<8x128xf32>
    %cst_5 = arith.constant 0.000000e+00 : f32
    %9 = vector.broadcast %cst_5 : f32 to vector<8x128xf32>
    %10 = arith.maximumf %8, %9 : vector<8x128xf32>
    %11 = vector.shape_cast %10 : vector<8x128xf32> to vector<1x8x128xf32>
    %cst_6 = arith.constant dense<0.000000e+00> : vector<8x128xf32>
    %12 = vector.multi_reduction <add>, %11, %cst_6 [0] : vector<1x8x128xf32> to vector<8x128xf32>
    %13 = vector.shape_cast %12 : vector<8x128xf32> to vector<1x8x128xf32>
    %c0_7 = arith.constant 0 : index
    %c0_8 = arith.constant 0 : index
    %c0_9 = arith.constant 0 : index
    %14 = vector.load %arg4[%c0_7, %c0_8, %c0_9] : memref<1x8x128xf32, #tpu.memory_space<vmem>>, vector<1x8x128xf32>
    tpu.vector_store %arg4[%c0_7, %c0_8, %c0_9], %13 {strides = array<i32>} : memref<1x8x128xf32, #tpu.memory_space<vmem>>, vector<1x8x128xf32>,
    return
  }
  func.func @transform_0(%arg0: i32, %arg1: i32) -> (i32, i32) {
    %c0_i32 = arith.constant 0 : i32
    return %arg0, %arg1 : i32, i32
  }
  func.func @transform_1(%arg0: i32, %arg1: i32) -> (i32, i32) {
    %c0_i32 = arith.constant 0 : i32
    return %arg0, %arg1 : i32, i32
  }
  func.func @transform_2(%arg0: i32, %arg1: i32) -> (i32, i32, i32) {
    %c0_i32 = arith.constant 0 : i32
    %c0_i32_0 = arith.constant 0 : i32
    return %arg0, %c0_i32, %arg1 : i32, i32, i32
  }
}

</mosaic_0001>

<llo_original>
// kernel: tpu_custom_call.1
$region0: #{tpu_custom_call.1}
  #allocation0 [shape = 'u32[]', space=smem, size = 0x4, offset = 0x4, fixed_abs, tag = 'smem constant byte address 0x4 - core index']
  #allocation1 [shape = 'u32[72,128]{1,0:T(1,128)}', space=vmem, size = 0x9000, scoped, tag = 'internal scratch']
  %s0 = inlined_call_operand.hbm [shape: f32[8,128], index: 0, kind: input, shape index: {}]
  %s1 = inlined_call_operand.hbm [shape: f32[8,128], index: 1, kind: input, shape index: {}]
  %s2 = inlined_call_operand.hbm [shape: f32[1,8,128], index: 2, kind: output, shape index: {}]
  %s3 = sld [smem:[#allocation0]]
  $region26: #{tpu_custom_call.1} parent=0
    _
  %s5 = ssub.s32 1, %s3
  %s6 = scalar_select 0, %s5, %s3
  $region1: #{tpu_custom_call.1} parent=0
    #allocation2 [shape = 'u8[4096]{0}', space=vmem, size = 0x1000, scoped, tag = 'input window, operand 0, single buffered']
    #allocation3 [shape = 's32[1]{0}', space=sflag, size = 0x4, scoped, tag = 'scoped memory for tpu_custom_call.1']
    #allocation4 [shape = 's32[1]{0}', space=sflag, size = 0x4, scoped, tag = 'scoped memory for tpu_custom_call.1']
    #allocation5 [shape = 'u8[4096]{0}', space=vmem, size = 0x1000, scoped, tag = 'input window, operand 1, single buffered']
    #allocation6 [shape = 's32[1]{0}', space=sflag, size = 0x4, scoped, tag = 'scoped memory for tpu_custom_call.1']
    #allocation7 [shape = 'u8[4096]{0}', space=vmem, size = 0x1000, scoped, tag = 'output window, operand 0, single buffered']
    %7 = vsyncpa [#allocation3], 0
    %8 = vsyncpa [#allocation6], 0
    %9 = vsyncpa [#allocation4], 0
    // Predicated region
    $region2: #{tpu_custom_call.1} parent=1 // pred_check
      _
    $region3: #{tpu_custom_call.1} parent=1 // pred_check_branch
      %11 = sbr.rel (0) target = $region5
    $region4: #{tpu_custom_call.1} parent=1 // pred_region
      %13 = vsyncadd [#allocation3], 0
      %s15 = sshll.u32 %s0, 4
      %s16 = int_to_ptr.hbm [resolvable:$true] %s15
      %s17 = sshll.u32 [#allocation2], 4
      %s18 = int_to_ptr.vmem [resolvable:$true] %s17
      %20 = dma.hbm_to_vmem [thread:$0]  %s16, 128, %s18, [#allocation3]
    $region5: #{tpu_custom_call.1} parent=1 // pred_fallthru
      _
    // Predicated region
    $region6: #{tpu_custom_call.1} parent=1 // pred_check
      _
    $region7: #{tpu_custom_call.1} parent=1 // pred_check_branch
      %22 = sbr.rel (0) target = $region9
    $region8: #{tpu_custom_call.1} parent=1 // pred_region
      %24 = vsyncadd [#allocation6], 0
      %s26 = sshll.u32 %s1, 4
      %s27 = int_to_ptr.hbm [resolvable:$true] %s26
      %s28 = sshll.u32 [#allocation5], 4
      %s29 = int_to_ptr.vmem [resolvable:$true] %s28
      %31 = dma.hbm_to_vmem [thread:$0]  %s27, 128, %s29, [#allocation6]
    $region9: #{tpu_custom_call.1} parent=1 // pred_fallthru
      _
    // Predicated region
    $region10: #{tpu_custom_call.1} parent=1 // pred_check
      _
    $region11: #{tpu_custom_call.1} parent=1 // pred_check_branch
      %33 = sbr.rel (0) target = $region13
    $region12: #{tpu_custom_call.1} parent=1 // pred_region
      %35 = dma.done [#allocation3], 128
    $region13: #{tpu_custom_call.1} parent=1 // pred_fallthru
      _
    // Predicated region
    $region14: #{tpu_custom_call.1} parent=1 // pred_check
      _
    $region15: #{tpu_custom_call.1} parent=1 // pred_check_branch
      %37 = sbr.rel (0) target = $region17
    $region16: #{tpu_custom_call.1} parent=1 // pred_region
      %39 = dma.done [#allocation6], 128
    $region17: #{tpu_custom_call.1} parent=1 // pred_fallthru
      _
    %v40 = vld [vmem:[#allocation2] sm:$0xff]
    %v41 = vld [vmem:[#allocation5] sm:$0xff]
    %v42 = vmul.f32 %v41, 2.0
    %v43 = vsub.f32 %v42, 1.0
    %v44 = vmul.f32 %v40, %v43
    %v45 = vsub.f32 1.0, %v44
    %v46 = vmax.f32 %v45, 0.0
    %v47 = vadd.f32 %v46, 0.0
    %48 = vst [vmem:[#allocation7] sm:$0xff] %v47
    // Predicated region
    $region18: #{tpu_custom_call.1} parent=1 // pred_check
      _
    $region19: #{tpu_custom_call.1} parent=1 // pred_check_branch
      %50 = sbr.rel (0) target = $region21
    $region20: #{tpu_custom_call.1} parent=1 // pred_region
      %52 = vsyncadd [#allocation4], 0
      %s54 = sshll.u32 [#allocation7], 4
      %s55 = int_to_ptr.vmem [resolvable:$true] %s54
      %s56 = sshll.u32 %s2, 4
      %s57 = int_to_ptr.hbm [resolvable:$true] %s56
      %59 = dma.vmem_to_hbm [thread:$0]  %s55, 128, %s57, [#allocation4]
    $region21: #{tpu_custom_call.1} parent=1 // pred_fallthru
      _
    // Predicated region
    $region22: #{tpu_custom_call.1} parent=1 // pred_check
      _
    $region23: #{tpu_custom_call.1} parent=1 // pred_check_branch
      %61 = sbr.rel (0) target = $region25
    $region24: #{tpu_custom_call.1} parent=1 // pred_region
      %63 = dma.done [#allocation4], 128
    $region25: #{tpu_custom_call.1} parent=1 // pred_fallthru
      _
    %64 = vsyncpa [#allocation3], 1
    %65 = vsyncpa [#allocation6], 1
    %66 = vsyncpa [#allocation4], 1

</llo_original>
